<compile_context>
chip_gen: v5e
topology: v5e:2x2
jax: 0.10.0
libtpu: 0.0.40
codegen_flags: <defaults>
</compile_context>

<pallas_src>
import jax
import jax.numpy as jnp
from jax import lax
from jax.experimental import pallas as pl
from jax.experimental.pallas import tpu as pltpu

_LANE = 128
_SUBLANE_BF16 = 16          # packed bf16 vreg is [16, 128]


def _round_up(v, m):
    return (v + m - 1) // m * m


def _vmem_capacity_bytes():
    try:
        return int(pltpu.get_tpu_info().vmem_capacity_bytes)
    except Exception:
        return 64 * 2**20   # conservative (v7x-sized) fallback


def _pick_h_tile(hp, dp, budget, h_cap):
    """Largest multiple of 128 dividing hp, under a double-buffered weight budget."""
    cap = max(_LANE, min(h_cap, (budget // (12 * dp)) // _LANE * _LANE))
    t = min(hp, cap)
    while hp % t:
        t -= _LANE
    return t


def _moe_ffn_kernel(ids_ref, nact_ref, tcnt_ref, x_ref, w13_ref, w2_ref, cw_ref,
                    o_ref):
    t = pl.program_id(0)
    h = pl.program_id(1)
    e = pl.program_id(2)

    # Output block is resident across the (h, e) reduction axes: zero it once
    # per token tile (first reduction step), independent of the compute gate.
    @pl.when((h == 0) & (e == 0))
    def _():
        o_ref[...] = jnp.zeros_like(o_ref)

    eid = ids_ref[e]
    # Skip padded (repeated) expert slots entirely, and skip (token tile,
    # expert) pairs with no routed tokens.  Padded slots also reuse the
    # previous step's weight block index, so their weight DMA is elided.
    @pl.when((e < nact_ref[0]) & (tcnt_ref[eid, t] > 0))
    def _():
        x = x_ref[...]                               # (tT, Dp)   bf16
        w13 = w13_ref[0, 0]                          # (Dp, 2*tH) bf16  [w1_t | w3_t]
        w2 = w2_ref[0]                               # (tH, Dp)   bf16
        t_h = w2_ref.shape[1]

        # One MXU matmul for both branches of the SwiGLU.
        h13 = jnp.dot(x, w13, preferred_element_type=jnp.float32)   # (tT, 2tH) f32
        h1 = h13[:, :t_h]
        h3 = h13[:, t_h:]
        hh = (h1 * jax.nn.sigmoid(h1)) * h3                          # silu(h1)*h3

        # Apply the per-token routing weight on the (tT, tH) intermediate
        # (factor Dp/tH cheaper than scaling y) -> accumulate is a plain add.
        hh = hh * cw_ref[0]                                          # (tT, 1) f32

        y = jnp.dot(hh.astype(jnp.bfloat16), w2,
                    preferred_element_type=jnp.float32)              # (tT, Dp) f32
        o_ref[...] += y


def moe_ffn_pallas(xp, combine_etp, ids, n_active, tile_counts, w13, w2p, *,
                   tile_t, tile_h, vmem_cap):
    Tp, Dp = xp.shape
    E = w2p.shape[0]
    Hp = w2p.shape[1]
    Ht = Hp // tile_h

    # VMEM estimate (double-buffered operands + resident f32 output + temps).
    w_bytes = 2 * (Dp * 2 * tile_h * 2 + tile_h * Dp * 2)
    io_bytes = 2 * (tile_t * Dp * 2 + tile_t * 4) + 2 * (tile_t * Dp * 4)
    tmp_bytes = 4 * tile_t * 2 * tile_h * 4
    vmem_limit = int(min(vmem_cap,
                         max(32 * 2**20, 2 * (w_bytes + io_bytes + tmp_bytes))))

    return pl.pallas_call(
        _moe_ffn_kernel,
        out_shape=jax.ShapeDtypeStruct((Tp, Dp), jnp.float32),
        grid_spec=pltpu.PrefetchScalarGridSpec(
            num_scalar_prefetch=3,        # active ids, n_active, per-tile counts
            # Expert axis innermost: padded (inactive) slots repeat the previous
            # block index for w13/w2/combine, so their HBM DMAs are elided.
            grid=(Tp // tile_t, Ht, E),
            in_specs=[
                # x: resident per token tile
                pl.BlockSpec((tile_t, Dp), lambda t, h, e, ids, na, tc: (t, 0)),
                # packed [w1|w3] tile: (Dp, 2*tH), MXU-native orientation
                pl.BlockSpec((1, 1, Dp, 2 * tile_h),
                             lambda t, h, e, ids, na, tc: (ids[e], h, 0, 0)),
                # w2 tile: (tH, Dp)
                pl.BlockSpec((1, tile_h, Dp),
                             lambda t, h, e, ids, na, tc: (ids[e], h, 0)),
                # combine column for this (expert, token tile): (tT, 1)
                pl.BlockSpec((1, tile_t, 1),
                             lambda t, h, e, ids, na, tc: (ids[e], t, 0)),
            ],
            out_specs=pl.BlockSpec((tile_t, Dp),
                                   lambda t, h, e, ids, na, tc: (t, 0)),
        ),
        compiler_params=pltpu.CompilerParams(
            dimension_semantics=("parallel", "arbitrary", "arbitrary"),
            vmem_limit_bytes=vmem_limit,
        ),
    )(ids, n_active, tile_counts, xp, w13, w2p, combine_etp)


def moe_forward(x, gate_w, w1, w2, w3):
    """MOEFeedForward.forward: x (..., dim) -> (T, dim)."""
    E, D = gate_w.shape
    H = w1.shape[1]
    xt = x.reshape(-1, D).astype(jnp.float32)
    T = xt.shape[0]

    # --- routing glue (tiny) in plain JAX: gate + top-2 + softmax ---
    scores = xt @ gate_w.T.astype(jnp.float32)                  # (T, E)
    ew, ei = lax.top_k(scores, 2)                               # (T, 2)
    ew = jax.nn.softmax(ew, axis=-1)
    combine = jnp.zeros((T, E), jnp.float32).at[
        jnp.arange(T)[:, None], ei].add(ew)                     # (T, E) dense weights
    counts = jnp.zeros((E,), jnp.int32).at[ei.reshape(-1)].add(1)

    # --- generation-aware tile / VMEM budgets ---
    vmem_phys = _vmem_capacity_bytes()
    big = vmem_phys >= 100 * 2**20                              # v5e/v6e (128 MiB)
    w_budget = (56 if big else 16) * 2**20
    h_cap = 1024 if big else 512
    vmem_cap = (96 if big else 40) * 2**20
    t_cap = 512 if big else 256

    Dp = _round_up(D, _LANE)
    Hp = _round_up(H, _LANE)
    # Multiple of 16 (bf16 sublane packing); large-T tiles are multiples of 128.
    tile_t = min(_round_up(T, _SUBLANE_BF16), t_cap)
    Tp = _round_up(T, tile_t)
    Tt = Tp // tile_t
    tile_h = _pick_h_tile(Hp, Dp, w_budget, h_cap)
    Ht = Hp // tile_h

    xp = jnp.pad(xt, ((0, Tp - T), (0, Dp - D))).astype(jnp.bfloat16)

    # Combine as (E, Tp, 1); padded token rows get weight 0.
    cmb = jnp.pad(combine, ((0, Tp - T), (0, 0)))
    cmb = cmb.T.reshape(E, Tp, 1)

    # Compacted active expert ids; the tail repeats the last active expert so
    # inactive grid slots reuse the previous weight block (DMA elided).
    active = counts > 0
    n_active = jnp.sum(active.astype(jnp.int32))
    order = jnp.argsort(jnp.where(active, jnp.arange(E), E + jnp.arange(E)))
    pos = jnp.arange(E)
    ids = order[jnp.minimum(pos, jnp.maximum(n_active - 1, 0))].astype(jnp.int32)
    n_active_arr = n_active.reshape(1).astype(jnp.int32)

    # Per (expert, token-tile) routed-token counts for per-tile compute gating.
    tok_tile = jnp.arange(T) // tile_t
    tile_counts = jnp.zeros((E, Tt), jnp.int32).at[
        ei, jnp.broadcast_to(tok_tile[:, None], ei.shape)].add(1)

    # Pack weights: w1/w3 -> (E, Dp, Hp), concat per H tile -> (E, Ht, Dp, 2*tH).
    w1t = jnp.pad(jnp.transpose(w1, (0, 2, 1)), ((0, 0), (0, Dp - D), (0, Hp - H)))
    w3t = jnp.pad(jnp.transpose(w3, (0, 2, 1)), ((0, 0), (0, Dp - D), (0, Hp - H)))
    w13 = jnp.concatenate(
        [w1t.reshape(E, Dp, Ht, tile_h), w3t.reshape(E, Dp, Ht, tile_h)], axis=-1)
    w13 = jnp.transpose(w13, (0, 2, 1, 3)).astype(jnp.bfloat16)   # (E, Ht, Dp, 2tH)

    w2p = jnp.pad(w2, ((0, 0), (0, Hp - H), (0, Dp - D))).astype(jnp.bfloat16)

    out = moe_ffn_pallas(xp, cmb, ids, n_active_arr, tile_counts, w13, w2p,
                         tile_t=tile_t, tile_h=tile_h, vmem_cap=vmem_cap)
    return out[:T, :D]


def moe_forward_ref(x, gate_w, w1, w2, w3, compute_dtype=jnp.float32):
    """Pure-JAX mirror of the torch math.  With compute_dtype=bfloat16 the FFN
    operands/intermediates are quantized the way the kernel's MXU path does
    (bf16 operands, f32 accumulation), giving an apples-to-apples comparison."""
    E, D = gate_w.shape
    xt = x.reshape(-1, D).astype(jnp.float32)
    scores = xt @ gate_w.T
    ew, ei = lax.top_k(scores, 2)
    ew = jax.nn.softmax(ew, axis=-1)

    q = lambda a: a.astype(compute_dtype).astype(jnp.float32)
    xq = q(xt)
    w1g, w2g, w3g = q(w1)[ei], q(w2)[ei], q(w3)[ei]       # (T, 2, H, D)
    x1 = jax.nn.silu(jnp.einsum('ti,tahi->tah', xq, w1g))
    x3 = jnp.einsum('ti,tahi->tah', xq, w3g)
    eo = jnp.einsum('tah,tahi->tai', q(x1 * x3), w2g)
    return jnp.einsum('tai,ta->ti', eo, ew)


if __name__ == "__main__":
    # Small, lane-aligned ModelArgs-consistent config.
    dim, hidden_dim, num_experts = 128, 256, 8
    batch, seq = 2, 8                                     # T = 16 tokens

    key = jax.random.PRNGKey(0)
    kx, kg, k1, k2, k3 = jax.random.split(key, 5)

    x = jax.random.normal(kx, (batch, seq, dim), dtype=jnp.float32)
    gate_w = jax.random.normal(kg, (num_experts, dim), dtype=jnp.float32)
    w1 = jax.random.normal(k1, (num_experts, hidden_dim, dim), dtype=jnp.float32)
    w2 = jax.random.normal(k2, (num_experts, hidden_dim, dim), dtype=jnp.float32)
    w3 = jax.random.normal(k3, (num_experts, hidden_dim, dim), dtype=jnp.float32)

    out = jax.block_until_ready(moe_forward(x, gate_w, w1, w2, w3))
    assert out.shape == (batch * seq, dim)

    # Compare against the reference with matched bf16 quantization of the FFN
    # operands (routing is identical f32 in both paths); expected ~1e-2 rel err
    # vs the true-f32 torch module due to the deliberate bf16 weight streaming.
    ref = moe_forward_ref(x, gate_w, w1, w2, w3, compute_dtype=jnp.bfloat16)
    scale = float(jnp.max(jnp.abs(ref))) + 1e-6
    err = float(jnp.max(jnp.abs(out - ref)))
    assert err <= 2e-2 * scale, (err, scale)

    print("KERNEL_OK")
</pallas_src>

<mosaic_0001>
module attributes {stable_mosaic.version = 11 : i64} {
  func.func @_moe_ffn_kernel(%arg0: i32, %arg1: i32, %arg2: i32, %arg3: memref<8xi32, #tpu.memory_space<smem>>, %arg4: memref<1xi32, #tpu.memory_space<smem>>, %arg5: memref<8x1xi32, #tpu.memory_space<smem>>, %arg6: memref<16x128xbf16, #tpu.memory_space<vmem>>, %arg7: memref<1x1x128x512xbf16, #tpu.memory_space<vmem>>, %arg8: memref<1x256x128xbf16, #tpu.memory_space<vmem>>, %arg9: memref<1x16x1xf32, #tpu.memory_space<vmem>>, %arg10: memref<16x128xf32, #tpu.memory_space<vmem>>) attributes {dimension_semantics = [#tpu.dimension_semantics<parallel>, #tpu.dimension_semantics<arbitrary>, #tpu.dimension_semantics<arbitrary>], iteration_bounds = array<i64: 1, 1, 8>, scalar_prefetch = 3 : i64, scratch_operands = 0 : i64, tpu.core_type = #tpu.core_type<tc>, window_params = [{transform_indices = @transform_0, window_bounds = array<i64: 16, 128>}, {transform_indices = @transform_1, window_bounds = array<i64: 1, 1, 128, 512>}, {transform_indices = @transform_2, window_bounds = array<i64: 1, 256, 128>}, {transform_indices = @transform_3, window_bounds = array<i64: 1, 16, 1>}, {transform_indices = @transform_4, window_bounds = array<i64: 16, 128>}]} {
    %c0_i32 = arith.constant 0 : i32
    %0 = arith.cmpi eq, %arg1, %c0_i32 : i32
    %c0_i32_0 = arith.constant 0 : i32
    %1 = arith.cmpi eq, %arg2, %c0_i32_0 : i32
    %2 = arith.andi %0, %1 : i1
    %3 = arith.extui %2 : i1 to i32
    %c0_i32_1 = arith.constant 0 : i32
    %4 = arith.cmpi ne, %3, %c0_i32_1 : i32
    scf.if %4 {
      %cst = arith.constant 0.000000e+00 : f32
      %16 = vector.broadcast %cst : f32 to vector<16x128xf32>
      %c0_4 = arith.constant 0 : index
      %c0_5 = arith.constant 0 : index
      %17 = vector.load %arg10[%c0_4, %c0_5] : memref<16x128xf32, #tpu.memory_space<vmem>>, vector<16x128xf32>
      tpu.vector_store %arg10[%c0_4, %c0_5], %16 {strides = array<i32>} : memref<16x128xf32, #tpu.memory_space<vmem>>, vector<16x128xf32>,
    } else {
    }
    %5 = arith.index_cast %arg2 : i32 to index
    %6 = memref.load %arg3[%5] : memref<8xi32, #tpu.memory_space<smem>>
    %c0 = arith.constant 0 : index
    %7 = memref.load %arg4[%c0] : memref<1xi32, #tpu.memory_space<smem>>
    %8 = arith.cmpi slt, %arg2, %7 : i32
    %9 = arith.index_cast %6 : i32 to index
    %10 = arith.index_cast %arg0 : i32 to index
    %11 = memref.load %arg5[%9, %10] : memref<8x1xi32, #tpu.memory_space<smem>>
    %c0_i32_2 = arith.constant 0 : i32
    %12 = arith.cmpi sgt, %11, %c0_i32_2 : i32
    %13 = arith.andi %8, %12 : i1
    %14 = arith.extui %13 : i1 to i32
    %c0_i32_3 = arith.constant 0 : i32
    %15 = arith.cmpi ne, %14, %c0_i32_3 : i32
    scf.if %15 {
      %c0_4 = arith.constant 0 : index
      %c0_5 = arith.constant 0 : index
      %16 = vector.load %arg6[%c0_4, %c0_5] : memref<16x128xbf16, #tpu.memory_space<vmem>>, vector<16x128xbf16>
      %c0_6 = arith.constant 0 : index
      %c0_7 = arith.constant 0 : index
      %c0_8 = arith.constant 0 : index
      %c0_9 = arith.constant 0 : index
      %17 = vector.load %arg7[%c0_6, %c0_7, %c0_8, %c0_9] : memref<1x1x128x512xbf16, #tpu.memory_space<vmem>>, vector<1x1x128x512xbf16>
      %18 = vector.shape_cast %17 : vector<1x1x128x512xbf16> to vector<128x512xbf16>
      %c0_10 = arith.constant 0 : index
      %c0_11 = arith.constant 0 : index
      %c0_12 = arith.constant 0 : index
      %19 = vector.load %arg8[%c0_10, %c0_11, %c0_12] : memref<1x256x128xbf16, #tpu.memory_space<vmem>>, vector<1x256x128xbf16>
      %20 = vector.shape_cast %19 : vector<1x256x128xbf16> to vector<256x128xbf16>
      %cst = arith.constant dense<0.000000e+00> : vector<16x512xf32>
      %21 = tpu.matmul %16, %18, %cst {dimension_numbers = #tpu.dot_dimension_numbers<[1], [0], [0], [1], [0, 0, 1, 1], [], []>} : vector<16x128xbf16>, vector<128x512xbf16>, vector<16x512xf32> -> vector<16x512xf32>
      %22 = vector.extract_strided_slice %21 {offsets = [0, 0], sizes = [16, 256], strides = [1, 1]} : vector<16x512xf32> to vector<16x256xf32>
      %23 = vector.extract_strided_slice %21 {offsets = [0, 256], sizes = [16, 256], strides = [1, 1]} : vector<16x512xf32> to vector<16x256xf32>
      %24 = arith.negf %22 : vector<16x256xf32>
      %25 = math.exp %24 : vector<16x256xf32>
      %cst_13 = arith.constant 1.000000e+00 : f32
      %26 = vector.broadcast %cst_13 : f32 to vector<16x256xf32>
      %27 = arith.addf %26, %25 : vector<16x256xf32>
      %28 = arith.divf %26, %27 : vector<16x256xf32>
      %29 = arith.mulf %22, %28 : vector<16x256xf32>
      %30 = arith.mulf %29, %23 : vector<16x256xf32>
      %c0_14 = arith.constant 0 : index
      %c0_15 = arith.constant 0 : index
      %c0_16 = arith.constant 0 : index
      %31 = vector.load %arg9[%c0_14, %c0_15, %c0_16] : memref<1x16x1xf32, #tpu.memory_space<vmem>>, vector<1x16x1xf32>
      %32 = vector.shape_cast %31 : vector<1x16x1xf32> to vector<16x1xf32>
      %33 = vector.broadcast %32 : vector<16x1xf32> to vector<16x256xf32>
      %34 = arith.mulf %30, %33 : vector<16x256xf32>
      %35 = arith.truncf %34 : vector<16x256xf32> to vector<16x256xbf16>
      %cst_17 = arith.constant dense<0.000000e+00> : vector<16x128xf32>
      %36 = tpu.matmul %35, %20, %cst_17 {dimension_numbers = #tpu.dot_dimension_numbers<[1], [0], [0], [1], [0, 0, 1, 1], [], []>} : vector<16x256xbf16>, vector<256x128xbf16>, vector<16x128xf32> -> vector<16x128xf32>
      %c0_18 = arith.constant 0 : index
      %c0_19 = arith.constant 0 : index
      %37 = vector.load %arg10[%c0_18, %c0_19] : memref<16x128xf32, #tpu.memory_space<vmem>>, vector<16x128xf32>
      %38 = arith.addf %37, %36 : vector<16x128xf32>
      %c0_20 = arith.constant 0 : index
      %c0_21 = arith.constant 0 : index
      %39 = vector.load %arg10[%c0_20, %c0_21] : memref<16x128xf32, #tpu.memory_space<vmem>>, vector<16x128xf32>
      tpu.vector_store %arg10[%c0_20, %c0_21], %38 {strides = array<i32>} : memref<16x128xf32, #tpu.memory_space<vmem>>, vector<16x128xf32>,
    } else {
    }
    return
  }
  func.func @transform_0(%arg0: i32, %arg1: i32, %arg2: i32, %arg3: memref<8xi32, #tpu.memory_space<smem>>, %arg4: memref<1xi32, #tpu.memory_space<smem>>, %arg5: memref<8x1xi32, #tpu.memory_space<smem>>) -> (i32, i32) {
    %c0_i32 = arith.constant 0 : i32
    %c0_i32_0 = arith.constant 0 : i32
    return %arg0, %c0_i32 : i32, i32
  }
  func.func @transform_1(%arg0: i32, %arg1: i32, %arg2: i32, %arg3: memref<8xi32, #tpu.memory_space<smem>>, %arg4: memref<1xi32, #tpu.memory_space<smem>>, %arg5: memref<8x1xi32, #tpu.memory_space<smem>>) -> (i32, i32, i32, i32) {
    %0 = arith.index_cast %arg2 : i32 to index
    %1 = memref.load %arg3[%0] : memref<8xi32, #tpu.memory_space<smem>>
    %c0_i32 = arith.constant 0 : i32
    %c0_i32_0 = arith.constant 0 : i32
    %c0_i32_1 = arith.constant 0 : i32
    return %1, %arg1, %c0_i32, %c0_i32_0 : i32, i32, i32, i32
  }
  func.func @transform_2(%arg0: i32, %arg1: i32, %arg2: i32, %arg3: memref<8xi32, #tpu.memory_space<smem>>, %arg4: memref<1xi32, #tpu.memory_space<smem>>, %arg5: memref<8x1xi32, #tpu.memory_space<smem>>) -> (i32, i32, i32) {
    %0 = arith.index_cast %arg2 : i32 to index
    %1 = memref.load %arg3[%0] : memref<8xi32, #tpu.memory_space<smem>>
    %c0_i32 = arith.constant 0 : i32
    %c0_i32_0 = arith.constant 0 : i32
    return %1, %arg1, %c0_i32 : i32, i32, i32
  }
  func.func @transform_3(%arg0: i32, %arg1: i32, %arg2: i32, %arg3: memref<8xi32, #tpu.memory_space<smem>>, %arg4: memref<1xi32, #tpu.memory_space<smem>>, %arg5: memref<8x1xi32, #tpu.memory_space<smem>>) -> (i32, i32, i32) {
    %0 = arith.index_cast %arg2 : i32 to index
    %1 = memref.load %arg3[%0] : memref<8xi32, #tpu.memory_space<smem>>
    %c0_i32 = arith.constant 0 : i32
    %c0_i32_0 = arith.constant 0 : i32
    return %1, %arg0, %c0_i32 : i32, i32, i32
  }
  func.func @transform_4(%arg0: i32, %arg1: i32, %arg2: i32, %arg3: memref<8xi32, #tpu.memory_space<smem>>, %arg4: memref<1xi32, #tpu.memory_space<smem>>, %arg5: memref<8x1xi32, #tpu.memory_space<smem>>) -> (i32, i32) {
    %c0_i32 = arith.constant 0 : i32
    %c0_i32_0 = arith.constant 0 : i32
    return %arg0, %c0_i32 : i32, i32
  }
}

</mosaic_0001>

<llo_original>
// kernel: tpu_custom_call.1
$region0: #{tpu_custom_call.1}
  #allocation0 [shape = 'u32[]', space=smem, size = 0x4, offset = 0x4, fixed_abs, tag = 'smem constant byte address 0x4 - core index']
  #allocation1 [shape = 'u32[72,128]{1,0:T(1,128)}', space=vmem, size = 0x9000, scoped, tag = 'internal scratch']
  #allocation2 [shape = 's32[1]{0}', space=sflag, size = 0x4, scoped, tag = 'scoped memory for tpu_custom_call.1']
  #allocation3 [shape = 'u8[512]{0}', space=smem, size = 0x200, scoped, tag = 'prefetched SMEM operand 0']
  #allocation4 [shape = 's32[1]{0:T(128)S(6)}', space=smem, size = 0x200, scoped, tag = 'prefetched SMEM operand 1']
  #allocation5 [shape = 'u8[4096]{0}', space=smem, size = 0x1000, scoped, tag = 'prefetched SMEM operand 2']
  %s0 = inlined_call_operand.vmem [shape: s32[8], index: 0, kind: input, shape index: {}]
  %s1 = inlined_call_operand.<no memory space> [shape: s32[1], index: 1, kind: input, shape index: {}]
  %s2 = inlined_call_operand.vmem [shape: s32[8,1], index: 2, kind: input, shape index: {}]
  %s3 = inlined_call_operand.vmem [shape: bf16[16,128], index: 3, kind: input, shape index: {}]
  %s4 = inlined_call_operand.hbm [shape: bf16[8,1,128,512], index: 4, kind: input, shape index: {}]
  %s5 = inlined_call_operand.hbm [shape: bf16[8,256,128], index: 5, kind: input, shape index: {}]
  %s6 = inlined_call_operand.vmem [shape: f32[8,16,1], index: 6, kind: input, shape index: {}]
  %s7 = inlined_call_operand.hbm [shape: f32[16,128], index: 7, kind: output, shape index: {}]
  %s8 = sld [smem:[#allocation0]]
  $region65: #{tpu_custom_call.1} parent=0
    _
  %s10 = ssub.s32 1, %s8
  %s11 = scalar_select 0, %s10, %s8
  %s13 = sshll.u32 %s0, 4
  %s14 = int_to_ptr.vmem [resolvable:$true] %s13
  %16 = dma.vmem_to_smem %s14, 16, [#allocation3], [#allocation2]
  %17 = sst [smem:[#allocation4]] %s1
  %s19 = sshll.u32 %s2, 4
  %s20 = int_to_ptr.vmem [resolvable:$true] %s19
  %22 = dma.vmem_to_smem %s20, 128, [#allocation5], [#allocation2]
  %24 = dma.done [#allocation2], 144
  %25 = sfence
  $region1: #{tpu_custom_call.1} parent=0
    #allocation6 [shape = 'u8[262144]{0}', space=vmem, size = 0x40000, scoped, tag = 'input window, operand 4']
    #allocation7 [shape = 's32[2]{0}', space=sflag, size = 0x8, scoped, tag = 'scoped memory for tpu_custom_call.1']
    #allocation8 [shape = 's32[2]{0}', space=sflag, size = 0x8, scoped, tag = 'scoped memory for tpu_custom_call.1']
    #allocation9 [shape = 'u8[131072]{0}', space=vmem, size = 0x20000, scoped, tag = 'input window, operand 5']
    #allocation10 [shape = 's32[2]{0}', space=sflag, size = 0x8, scoped, tag = 'scoped memory for tpu_custom_call.1']
    #allocation11 [shape = 'u8[8192]{0}', space=vmem, size = 0x2000, scoped, tag = 'output window, operand 0, single buffered']
    %26 = vsyncpa [#allocation7], 0
    %s27 = scalar_lea.sflag [#allocation7], 1
    %28 = vsyncpa %s27, 0
    %29 = vsyncpa [#allocation10], 0
    %s30 = scalar_lea.sflag [#allocation10], 1
    %31 = vsyncpa %s30, 0
    %32 = vsyncpa [#allocation8], 0
    loop: start=0, step=1, limit=10
    $region2: #{tpu_custom_call.1} parent=1 // loop_pre_header
      _
    $region3: #{tpu_custom_call.1} parent=1 // loop_header
      %s34 = sphi 0, %s38
      %p35 = scmp.ge.s32.totalorder %s34, 10
      %s41 = sphi 0, %s60
      %s42 = sphi 0, %s56
      %s43 = sphi 0, %s52
      %s44 = sphi 0, %s41
      %s45 = sphi 0, %s42
      %s46 = sphi 0, %s43
      %s47 = sphi 0, %s44
      %s48 = sphi 0, %s45
      %s49 = sphi 0, %s46
      %s63 = sphi 0, %s65
      %s66 = sphi 0, %s63
      %s67 = sphi 0, %s66
      %s83 = sphi 0, %s67
      %s93 = sphi 0, %s95
      %s96 = sphi 0, %s93
      %s97 = sphi 0, %s96
      %s113 = sphi 0, %s97
      %s123 = sphi 0, %s125
      %s126 = sphi 0, %s123
      %s127 = sphi 0, %s126
      %s143 = sphi 0, %s127
      %s153 = sphi 0, %s155
      %s156 = sphi 0, %s153
      %s157 = sphi 0, %s156
      %s173 = sphi 0, %s157
      %s179 = sphi 0, %s181
      %s182 = sphi 0, %s179
      %s183 = sphi 0, %s182
      %s199 = sphi 0, %s183
    $region4: #{tpu_custom_call.1} parent=1 // loop_header_branch
      %37 = sbr.rel (%p35) target = $region8
    $region5: #{tpu_custom_call.1} parent=1 // loop_body
      %s39 = ssub.s32 %s34, 1
      %s40 = ssub.s32 %s34, 2
      %s50 = sadd.s32 1, %s43
      %p51 = scmp.ge.s32.totalorder %s50, 8
      %s52 = scalar_select %p51, 0, %s50
      %s53 = sadd.s32 1, %s42
      %s54 = scalar_select %p51, %s53, %s42
      %p55 = scmp.ge.s32.totalorder %s54, 1
      %s56 = scalar_select %p55, 0, %s54
      %s57 = sadd.s32 1, %s41
      %s58 = scalar_select %p55, %s57, %s41
      %p59 = scmp.ge.s32.totalorder %s58, 1
      %s60 = scalar_select %p59, 0, %s58
      %s61 = ssub.s32 %s41, %s60
      %p62 = scmp.eq.s32.totalorder %s61, 0
      %s64 = sadd.s32 %s63, 1
      %s65 = scalar_select %p62, %s63, %s64
      %p68 = pneg %p62
      %p69 = scmp.eq.s32.totalorder %s34, 7
      %p70 = por %p68, %p69
      %p71 = scmp.ne.s32.totalorder %s63, %s66
      %p72 = scmp.eq.s32.totalorder %s34, 0
      %p73 = por %p71, %p72
      %p74 = scmp.ne.s32.totalorder %s63, %s66
      %p75 = scmp.eq.s32.totalorder %s39, 7
      %p76 = por %p74, %p75
      %p77 = scmp.ne.s32.totalorder %s66, %s67
      %p78 = scmp.eq.s32.totalorder %s39, 0
      %p79 = por %p77, %p78
      %p80 = scmp.ne.s32.totalorder %s66, %s67
      %p81 = scmp.eq.s32.totalorder %s40, 7
      %p82 = por %p80, %p81
      %p84 = scmp.ne.s32.totalorder %s67, %s83
      %p85 = scmp.eq.s32.totalorder %s40, 0
      %p86 = por %p84, %p85
      %s87 = sld [smem:[#allocation3 + %s43]]
      %s88 = sld [smem:[#allocation3 + %s52]]
      %s89 = ssub.s32 %s87, %s88
      %s90 = ssub.s32 %s42, %s56
      %s91 = sor.u32 %s89, %s90
      %p92 = scmp.eq.s32.totalorder %s91, 0
      %s94 = sadd.s32 %s93, 1
      %s95 = scalar_select %p92, %s93, %s94
      %p98 = pneg %p92
      %p99 = scmp.eq.s32.totalorder %s34, 7
      %p100 = por %p98, %p99
      %p101 = scmp.ne.s32.totalorder %s93, %s96
      %p102 = scmp.eq.s32.totalorder %s34, 0
      %p103 = por %p101, %p102
      %p104 = scmp.ne.s32.totalorder %s93, %s96
      %p105 = scmp.eq.s32.totalorder %s39, 7
      %p106 = por %p104, %p105
      %p107 = scmp.ne.s32.totalorder %s96, %s97
      %p108 = scmp.eq.s32.totalorder %s39, 0
      %p109 = por %p107, %p108
      %p110 = scmp.ne.s32.totalorder %s96, %s97
      %p111 = scmp.eq.s32.totalorder %s40, 7
      %p112 = por %p110, %p111
      %p114 = scmp.ne.s32.totalorder %s97, %s113
      %p115 = scmp.eq.s32.totalorder %s40, 0
      %p116 = por %p114, %p115
      %s117 = sld [smem:[#allocation3 + %s43]]
      %s118 = sld [smem:[#allocation3 + %s52]]
      %s119 = ssub.s32 %s117, %s118
      %s120 = ssub.s32 %s42, %s56
      %s121 = sor.u32 %s119, %s120
      %p122 = scmp.eq.s32.totalorder %s121, 0
      %s124 = sadd.s32 %s123, 1
      %s125 = scalar_select %p122, %s123, %s124
      %p128 = pneg %p122
      %p129 = scmp.eq.s32.totalorder %s34, 7
      %p130 = por %p128, %p129
      %p131 = scmp.ne.s32.totalorder %s123, %s126
      %p132 = scmp.eq.s32.totalorder %s34, 0
      %p133 = por %p131, %p132
      %p134 = scmp.ne.s32.totalorder %s123, %s126
      %p135 = scmp.eq.s32.totalorder %s39, 7
      %p136 = por %p134, %p135
      %p137 = scmp.ne.s32.totalorder %s126, %s127
      %p138 = scmp.eq.s32.totalorder %s39, 0
      %p139 = por %p137, %p138
      %p140 = scmp.ne.s32.totalorder %s126, %s127
      %p141 = scmp.eq.s32.totalorder %s40, 7
      %p142 = por %p140, %p141
      %p144 = scmp.ne.s32.totalorder %s127, %s143
      %p145 = scmp.eq.s32.totalorder %s40, 0
      %p146 = por %p144, %p145
      %s147 = sld [smem:[#allocation3 + %s43]]
      %s148 = sld [smem:[#allocation3 + %s52]]
      %s149 = ssub.s32 %s147, %s148
      %s150 = ssub.s32 %s41, %s60
      %s151 = sor.u32 %s149, %s150
      %p152 = scmp.eq.s32.totalorder %s151, 0
      %s154 = sadd.s32 %s153, 1
      %s155 = scalar_select %p152, %s153, %s154
      %p158 = pneg %p152
      %p159 = scmp.eq.s32.totalorder %s34, 7
      %p160 = por %p158, %p159
      %p161 = scmp.ne.s32.totalorder %s153, %s156
      %p162 = scmp.eq.s32.totalorder %s34, 0
      %p163 = por %p161, %p162
      %p164 = scmp.ne.s32.totalorder %s153, %s156
      %p165 = scmp.eq.s32.totalorder %s39, 7
      %p166 = por %p164, %p165
      %p167 = scmp.ne.s32.totalorder %s156, %s157
      %p168 = scmp.eq.s32.totalorder %s39, 0
      %p169 = por %p167, %p168
      %p170 = scmp.ne.s32.totalorder %s156, %s157
      %p171 = scmp.eq.s32.totalorder %s40, 7
      %p172 = por %p170, %p171
      %p174 = scmp.ne.s32.totalorder %s157, %s173
      %p175 = scmp.eq.s32.totalorder %s40, 0
      %p176 = por %p174, %p175
      %s177 = ssub.s32 %s41, %s60
      %p178 = scmp.eq.s32.totalorder %s177, 0
      %s180 = sadd.s32 %s179, 1
      %s181 = scalar_select %p178, %s179, %s180
      %p184 = pneg %p178
      %p185 = scmp.eq.s32.totalorder %s34, 7
      %p186 = por %p184, %p185
      %p187 = scmp.ne.s32.totalorder %s179, %s182
      %p188 = scmp.eq.s32.totalorder %s34, 0
      %p189 = por %p187, %p188
      %p190 = scmp.ne.s32.totalorder %s179, %s182
      %p191 = scmp.eq.s32.totalorder %s39, 7
      %p192 = por %p190, %p191
      %p193 = scmp.ne.s32.totalorder %s182, %s183
      %p194 = scmp.eq.s32.totalorder %s39, 0
      %p195 = por %p193, %p194
      %p196 = scmp.ne.s32.totalorder %s182, %s183
      %p197 = scmp.eq.s32.totalorder %s40, 7
      %p198 = por %p196, %p197
      %p200 = scmp.ne.s32.totalorder %s183, %s199
      %p201 = scmp.eq.s32.totalorder %s40, 0
      %p202 = por %p200, %p201
      %p203 = scmp.le.s32.totalorder 1, %s34
      %p204 = scmp.lt.s32.totalorder %s34, 9
      %p205 = pnand %p203, %p204
      %p206 = pneg %p205
      // Predicated region
      $region9: #{tpu_custom_call.1} parent=5 // pred_check
        _
      $region10: #{tpu_custom_call.1} parent=5 // pred_check_branch
        %208 = sbr.rel (%p205) target = $region12
      $region11: #{tpu_custom_call.1} parent=5 // pred_region
        %s209 = ssub.s32 %s34, 1
        // Predicated region
        $region13: #{tpu_custom_call.1} parent=11 // pred_check
          %p210 = pneg %p79
        $region14: #{tpu_custom_call.1} parent=11 // pred_check_branch
          %212 = sbr.rel (%p210) target = $region16
        $region15: #{tpu_custom_call.1} parent=11 // pred_region
          %s213 = smul.u32 2, %s44
          %p214 = scmp.lt.s32.totalorder %s213, 1
          %s215 = scalar_select %p214, %s213, 1
          %s216 = smul.addr %s215, 4
          %s217 = scalar_lea.vmem %s3, %s216
          %s218 = smul.u32 2, %s44
        $region16: #{tpu_custom_call.1} parent=11 // pred_fallthru
          _
      $region12: #{tpu_custom_call.1} parent=5 // pred_fallthru
        _
      %p219 = scmp.lt.s32.totalorder %s34, 8
      // Predicated region
      $region17: #{tpu_custom_call.1} parent=5 // pred_check
        %p220 = pneg %p219
      $region18: #{tpu_custom_call.1} parent=5 // pred_check_branch
        %222 = sbr.rel (%p220) target = $region20
      $region19: #{tpu_custom_call.1} parent=5 // pred_region
        // Predicated region
        $region21: #{tpu_custom_call.1} parent=19 // pred_check
          %p223 = pneg %p103
        $region22: #{tpu_custom_call.1} parent=19 // pred_check_branch
          %225 = sbr.rel (%p223) target = $region24
        $region23: #{tpu_custom_call.1} parent=19 // pred_region
          %s226 = sand.u32 %s93, 1
          %s227 = scalar_lea.sflag [#allocation7], %s226
          %s228 = sand.u32 %s93, 1
          %s229 = smul.addr %s228, 256
          %s230 = scalar_lea.vmem [#allocation6], %s229
          %s231 = sld [smem:[#allocation3 + %s43]]
          %233 = vsyncadd %s227, 0
          %s234 = smul.addr %s42, 64
          %s235 = smul.addr %s231, 64
          %s236 = sadd.s32 %s234, %s235
          %s237 = smul.addr %s236, 4
          %s238 = scalar_lea.hbm %s4, %s237
          %s239 = sshll.u32 %s238, 4
          %s240 = int_to_ptr.hbm [resolvable:$true] %s239
          %s241 = sshll.u32 %s230, 4
          %s242 = int_to_ptr.vmem [resolvable:$true] %s241
          %247 = dma.hbm_to_vmem [thread:$0]  %s240, 4096, %s242, %s227, 256, 256, 16
        $region24: #{tpu_custom_call.1} parent=19 // pred_fallthru
          _
        // Predicated region
        $region25: #{tpu_custom_call.1} parent=19 // pred_check
          %p248 = pneg %p133
        $region26: #{tpu_custom_call.1} parent=19 // pred_check_branch
          %250 = sbr.rel (%p248) target = $region28
        $region27: #{tpu_custom_call.1} parent=19 // pred_region
          %s251 = sand.u32 %s123, 1
          %s252 = scalar_lea.sflag [#allocation10], %s251
          %s253 = sand.u32 %s123, 1
          %s254 = smul.addr %s253, 128
          %s255 = scalar_lea.vmem [#allocation9], %s254
          %s256 = sld [smem:[#allocation3 + %s43]]
          %s257 = smul.u32 32, %s42
          %259 = vsyncadd %s252, 0
          %s260 = smul.addr %s256, 32
          %s261 = sadd.s32 %s257, %s260
          %s262 = smul.addr %s261, 4
          %s263 = scalar_lea.hbm %s5, %s262
          %s264 = sshll.u32 %s263, 4
          %s265 = int_to_ptr.hbm [resolvable:$true] %s264
          %s266 = sshll.u32 %s255, 4
          %s267 = int_to_ptr.vmem [resolvable:$true] %s266
          %272 = dma.hbm_to_vmem [thread:$0]  %s265, 2048, %s267, %s252, 64, 64, 4
        $region28: #{tpu_custom_call.1} parent=19 // pred_fallthru
          _
        // Predicated region
        $region29: #{tpu_custom_call.1} parent=19 // pred_check
          %p273 = pneg %p163
        $region30: #{tpu_custom_call.1} parent=19 // pred_check_branch
          %275 = sbr.rel (%p273) target = $region32
        $region31: #{tpu_custom_call.1} parent=19 // pred_region
          %s276 = sld [smem:[#allocation3 + %s43]]
          %s277 = smul.u32 2, %s41
          %p278 = scmp.lt.s32.totalorder %s276, 7
          %s279 = scalar_select %p278, %s276, 7
          %p280 = scmp.lt.s32.totalorder %s277, 1
          %s281 = scalar_select %p280, %s277, 1
          %s282 = smul.addr %s279, 2
          %s283 = sadd.s32 %s281, %s282
          %s284 = smul.addr %s283, 8
          %s285 = scalar_lea.vmem %s6, %s284
          %s286 = sld [smem:[#allocation3 + %s43]]
          %s287 = smul.u32 2, %s41
        $region32: #{tpu_custom_call.1} parent=19 // pred_fallthru
          _
      $region20: #{tpu_custom_call.1} parent=5 // pred_fallthru
        _
      %p288 = scmp.le.s32.totalorder 1, %s34
      %p289 = scmp.lt.s32.totalorder %s34, 9
      %p290 = pnand %p288, %p289
      %p291 = pneg %p290
      // Predicated region
      $region33: #{tpu_custom_call.1} parent=5 // pred_check
        _
      $region34: #{tpu_custom_call.1} parent=5 // pred_check_branch
        %293 = sbr.rel (%p290) target = $region36
      $region35: #{tpu_custom_call.1} parent=5 // pred_region
        %s294 = ssub.s32 %s34, 1
        %s295 = sand.u32 %s96, 1
        %s296 = scalar_lea.sflag [#allocation7], %s295
        %s297 = sand.u32 %s96, 1
        %s298 = smul.addr %s297, 256
        %s299 = scalar_lea.vmem [#allocation6], %s298
        // Predicated region
        $region37: #{tpu_custom_call.1} parent=35 // pred_check
          %p300 = pneg %p109
        $region38: #{tpu_custom_call.1} parent=35 // pred_check_branch
          %302 = sbr.rel (%p300) target = $region40
        $region39: #{tpu_custom_call.1} parent=35 // pred_region
          %304 = dma.done %s296, 4096
        $region40: #{tpu_custom_call.1} parent=35 // pred_fallthru
          _
        %s305 = sand.u32 %s126, 1
        %s306 = scalar_lea.sflag [#allocation10], %s305
        %s307 = sand.u32 %s126, 1
        %s308 = smul.addr %s307, 128
        %s309 = scalar_lea.vmem [#allocation9], %s308
        // Predicated region
        $region41: #{tpu_custom_call.1} parent=35 // pred_check
          %p310 = pneg %p139
        $region42: #{tpu_custom_call.1} parent=35 // pred_check_branch
          %312 = sbr.rel (%p310) target = $region44
        $region43: #{tpu_custom_call.1} parent=35 // pred_region
          %314 = dma.done %s306, 2048
        $region44: #{tpu_custom_call.1} parent=35 // pred_fallthru
          _
        %s315 = smul.u32 2, %s44
        %p316 = scmp.lt.s32.totalorder %s315, 1
        %s317 = scalar_select %p316, %s315, 1
        %s318 = smul.addr %s317, 4
        %s319 = scalar_lea.vmem %s3, %s318
        %p320 = pneg %p79
        %p321 = pneg %p76
        %s322 = sand.u32 %s96, 1
        %s323 = scalar_lea.sflag [#allocation7], %s322
        %s324 = sand.u32 %s96, 1
        %s325 = smul.addr %s324, 256
        %s326 = scalar_lea.vmem [#allocation6], %s325
        %p327 = pneg %p109
        %p328 = pneg %p106
        %s329 = sand.u32 %s126, 1
        %s330 = scalar_lea.sflag [#allocation10], %s329
        %s331 = sand.u32 %s126, 1
        %s332 = smul.addr %s331, 128
        %s333 = scalar_lea.vmem [#allocation9], %s332
        %p334 = pneg %p139
        %p335 = pneg %p136
        %s336 = sld [smem:[#allocation3 + %s46]]
        %s337 = smul.u32 2, %s44
        %p338 = scmp.lt.s32.totalorder %s336, 7
        %s339 = scalar_select %p338, %s336, 7
        %p340 = scmp.lt.s32.totalorder %s337, 1
        %s341 = scalar_select %p340, %s337, 1
        %s342 = smul.addr %s339, 2
        %s343 = sadd.s32 %s341, %s342
        %s344 = smul.addr %s343, 8
        %s345 = scalar_lea.vmem %s6, %s344
        %p346 = pneg %p169
        %p347 = pneg %p166
        %p348 = pneg %p195
        %p349 = pneg %p192
        %s350 = smul.u32 2, %s44
        %p351 = scmp.lt.s32.totalorder %s350, 1
        %s352 = scalar_select %p351, %s350, 1
        %s353 = smul.addr %s352, 4
        %s354 = scalar_lea.vmem %s3, %s353
        %s355 = smul.u32 2, %s44
        %s356 = sld [smem:[#allocation3 + %s46]]
        %s357 = sld [smem:[#allocation3 + %s46]]
        %s358 = smul.u32 32, %s45
        %s359 = sld [smem:[#allocation3 + %s46]]
        %s360 = smul.u32 2, %s44
        %p361 = scmp.lt.s32.totalorder %s359, 7
        %s362 = scalar_select %p361, %s359, 7
        %p363 = scmp.lt.s32.totalorder %s360, 1
        %s364 = scalar_select %p363, %s360, 1
        %s365 = smul.addr %s362, 2
        %s366 = sadd.s32 %s364, %s365
        %s367 = smul.addr %s366, 8
        %s368 = scalar_lea.vmem %s6, %s367
        %s369 = sld [smem:[#allocation3 + %s46]]
        %s370 = smul.u32 2, %s44
        %s371 = smul.u32 2, %s44
        %p372 = scmp.eq.s32.totalorder %s45, 0
        %p373 = scmp.eq.s32.totalorder %s46, 0
        %p374 = pnand %p372, %p373
        %p375 = pneg %p374
        // Predicated region
        $region45: #{tpu_custom_call.1} parent=35 // pred_check
          _
        $region46: #{tpu_custom_call.1} parent=35 // pred_check_branch
          %377 = sbr.rel (%p374) target = $region48
        $region47: #{tpu_custom_call.1} parent=35 // pred_region
          %378 = vst [vmem:[#allocation11] sm:$0xff] 0.0
          %379 = vst [vmem:[#allocation11 + $0x8] sm:$0xff] 0.0
        $region48: #{tpu_custom_call.1} parent=35 // pred_fallthru
          _
        %s380 = sld [smem:[#allocation3 + %s46]]
        %s381 = sld [smem:[#allocation4]]
        %p382 = scmp.lt.s32.totalorder %s46, %s381
        %s383 = sshra.s32 %s44, 7
        %s384 = sand.u32 %s44, 127
        %s385 = sadd.s32 %s383, %s380
        %s386 = smul.u32 %s385, 128
        %s387 = sshra.s32 %s44, 7
        %s388 = sand.u32 %s44, 127
        %s389 = sadd.s32 %s386, %s388
        %s390 = sld [smem:[#allocation5 + %s389]]
        %p391 = scmp.gt.s32.totalorder %s390, 0
        %p392 = pnand %p382, %p391
        %p393 = pneg %p392
        // Predicated region
        $region49: #{tpu_custom_call.1} parent=35 // pred_check
          _
        $region50: #{tpu_custom_call.1} parent=35 // pred_check_branch
          %395 = sbr.rel (%p392) target = $region52
        $region51: #{tpu_custom_call.1} parent=35 // pred_region
          %v396 = vld [vmem:[%s354] sm:$0xf]
          %v397 = vld [vmem:[%s354 + $0x4] sm:$0xf]
          %v398 = vld [vmem:[%s299] sm:$0xff]
          %v399 = vld [vmem:[%s299 + $0x8] sm:$0xff]
          %v400 = vld [vmem:[%s299 + $0x10] sm:$0xff]
          %v401 = vld [vmem:[%s299 + $0x18] sm:$0xff]
          %v402 = vld [vmem:[%s299 + $0x20] sm:$0xff]
          %v403 = vld [vmem:[%s299 + $0x28] sm:$0xff]
          %v404 = vld [vmem:[%s299 + $0x30] sm:$0xff]
          %v405 = vld [vmem:[%s299 + $0x38] sm:$0xff]
          %v406 = vld [vmem:[%s299 + $0x40] sm:$0xff]
          %v407 = vld [vmem:[%s299 + $0x48] sm:$0xff]
          %v408 = vld [vmem:[%s299 + $0x50] sm:$0xff]
          %v409 = vld [vmem:[%s299 + $0x58] sm:$0xff]
          %v410 = vld [vmem:[%s299 + $0x60] sm:$0xff]
          %v411 = vld [vmem:[%s299 + $0x68] sm:$0xff]
          %v412 = vld [vmem:[%s299 + $0x70] sm:$0xff]
          %v413 = vld [vmem:[%s299 + $0x78] sm:$0xff]
          %v414 = vld [vmem:[%s299 + $0x80] sm:$0xff]
          %v415 = vld [vmem:[%s299 + $0x88] sm:$0xff]
          %v416 = vld [vmem:[%s299 + $0x90] sm:$0xff]
          %v417 = vld [vmem:[%s299 + $0x98] sm:$0xff]
          %v418 = vld [vmem:[%s299 + $0xa0] sm:$0xff]
          %v419 = vld [vmem:[%s299 + $0xa8] sm:$0xff]
          %v420 = vld [vmem:[%s299 + $0xb0] sm:$0xff]
          %v421 = vld [vmem:[%s299 + $0xb8] sm:$0xff]
          %v422 = vld [vmem:[%s299 + $0xc0] sm:$0xff]
          %v423 = vld [vmem:[%s299 + $0xc8] sm:$0xff]
          %v424 = vld [vmem:[%s299 + $0xd0] sm:$0xff]
          %v425 = vld [vmem:[%s299 + $0xd8] sm:$0xff]
          %v426 = vld [vmem:[%s299 + $0xe0] sm:$0xff]
          %v427 = vld [vmem:[%s299 + $0xe8] sm:$0xff]
          %v428 = vld [vmem:[%s299 + $0xf0] sm:$0xff]
          %v429 = vld [vmem:[%s299 + $0xf8] sm:$0xff]
          %v430 = vld [vmem:[%s309] sm:$0xf]
          %v431 = vld [vmem:[%s309 + $0x4] sm:$0xf]
          %v432 = vld [vmem:[%s309 + $0x8] sm:$0xf]
          %v433 = vld [vmem:[%s309 + $0xc] sm:$0xf]
          %v434 = vld [vmem:[%s309 + $0x10] sm:$0xf]
          %v435 = vld [vmem:[%s309 + $0x14] sm:$0xf]
          %v436 = vld [vmem:[%s309 + $0x18] sm:$0xf]
          %v437 = vld [vmem:[%s309 + $0x1c] sm:$0xf]
          %v438 = vld [vmem:[%s309 + $0x20] sm:$0xf]
          %v439 = vld [vmem:[%s309 + $0x24] sm:$0xf]
          %v440 = vld [vmem:[%s309 + $0x28] sm:$0xf]
          %v441 = vld [vmem:[%s309 + $0x2c] sm:$0xf]
          %v442 = vld [vmem:[%s309 + $0x30] sm:$0xf]
          %v443 = vld [vmem:[%s309 + $0x34] sm:$0xf]
          %v444 = vld [vmem:[%s309 + $0x38] sm:$0xf]
          %v445 = vld [vmem:[%s309 + $0x3c] sm:$0xf]
          %v446 = vld [vmem:[%s309 + $0x40] sm:$0xf]
          %v447 = vld [vmem:[%s309 + $0x44] sm:$0xf]
          %v448 = vld [vmem:[%s309 + $0x48] sm:$0xf]
          %v449 = vld [vmem:[%s309 + $0x4c] sm:$0xf]
          %v450 = vld [vmem:[%s309 + $0x50] sm:$0xf]
          %v451 = vld [vmem:[%s309 + $0x54] sm:$0xf]
          %v452 = vld [vmem:[%s309 + $0x58] sm:$0xf]
          %v453 = vld [vmem:[%s309 + $0x5c] sm:$0xf]
          %v454 = vld [vmem:[%s309 + $0x60] sm:$0xf]
          %v455 = vld [vmem:[%s309 + $0x64] sm:$0xf]
          %v456 = vld [vmem:[%s309 + $0x68] sm:$0xf]
          %v457 = vld [vmem:[%s309 + $0x6c] sm:$0xf]
          %v458 = vld [vmem:[%s309 + $0x70] sm:$0xf]
          %v459 = vld [vmem:[%s309 + $0x74] sm:$0xf]
          %v460 = vld [vmem:[%s309 + $0x78] sm:$0xf]
          %v461 = vld [vmem:[%s309 + $0x7c] sm:$0xf]
          %v464 = vunpack.c.l.b16 %v396
          %v465 = vunpack.c.l.b16 %v397
          %v466 = vpack.c.b16 %v465, %v464
          %v500 = vunpack.c.l.b16 %v398
          %v501 = vunpack.c.h.b16 %v398
          %v502 = vunpack.c.l.b16 %v399
          %v503 = vunpack.c.h.b16 %v399
          %v504 = vunpack.c.l.b16 %v400
          %v505 = vunpack.c.h.b16 %v400
          %v506 = vunpack.c.l.b16 %v401
          %v507 = vunpack.c.h.b16 %v401
          %v508 = vunpack.c.l.b16 %v402
          %v509 = vunpack.c.h.b16 %v402
          %v510 = vunpack.c.l.b16 %v403
          %v511 = vunpack.c.h.b16 %v403
          %v512 = vunpack.c.l.b16 %v404
          %v513 = vunpack.c.h.b16 %v404
          %v514 = vunpack.c.l.b16 %v405
          %v515 = vunpack.c.h.b16 %v405
          %v516 = vunpack.c.l.b16 %v406
          %v517 = vunpack.c.h.b16 %v406
          %v518 = vunpack.c.l.b16 %v407
          %v519 = vunpack.c.h.b16 %v407
          %v520 = vunpack.c.l.b16 %v408
          %v521 = vunpack.c.h.b16 %v408
          %v522 = vunpack.c.l.b16 %v409
          %v523 = vunpack.c.h.b16 %v409
          %v524 = vunpack.c.l.b16 %v410
          %v525 = vunpack.c.h.b16 %v410
          %v526 = vunpack.c.l.b16 %v411
          %v527 = vunpack.c.h.b16 %v411
          %v528 = vunpack.c.l.b16 %v412
          %v529 = vunpack.c.h.b16 %v412
          %v530 = vunpack.c.l.b16 %v413
          %v531 = vunpack.c.h.b16 %v413
          %v532 = vunpack.c.l.b16 %v414
          %v533 = vunpack.c.h.b16 %v414
          %v534 = vunpack.c.l.b16 %v415
          %v535 = vunpack.c.h.b16 %v415
          %v536 = vunpack.c.l.b16 %v416
          %v537 = vunpack.c.h.b16 %v416
          %v538 = vunpack.c.l.b16 %v417
          %v539 = vunpack.c.h.b16 %v417
          %v540 = vunpack.c.l.b16 %v418
          %v541 = vunpack.c.h.b16 %v418
          %v542 = vunpack.c.l.b16 %v419
          %v543 = vunpack.c.h.b16 %v419
          %v544 = vunpack.c.l.b16 %v420
          %v545 = vunpack.c.h.b16 %v420
          %v546 = vunpack.c.l.b16 %v421
          %v547 = vunpack.c.h.b16 %v421
          %v548 = vunpack.c.l.b16 %v422
          %v549 = vunpack.c.h.b16 %v422
          %v550 = vunpack.c.l.b16 %v423
          %v551 = vunpack.c.h.b16 %v423
          %v552 = vunpack.c.l.b16 %v424
          %v553 = vunpack.c.h.b16 %v424
          %v554 = vunpack.c.l.b16 %v425
          %v555 = vunpack.c.h.b16 %v425
          %v556 = vunpack.c.l.b16 %v426
          %v557 = vunpack.c.h.b16 %v426
          %v558 = vunpack.c.l.b16 %v427
          %v559 = vunpack.c.h.b16 %v427
          %v560 = vunpack.c.l.b16 %v428
          %v561 = vunpack.c.h.b16 %v428
          %v562 = vunpack.c.l.b16 %v429
          %v563 = vunpack.c.h.b16 %v429
          %v564 = vpack.c.b16 %v504, %v500
          %v565 = vpack.c.b16 %v505, %v501
          %v566 = vpack.c.b16 %v506, %v502
          %v567 = vpack.c.b16 %v507, %v503
          %v568 = vpack.c.b16 %v512, %v508
          %v569 = vpack.c.b16 %v513, %v509
          %v570 = vpack.c.b16 %v514, %v510
          %v571 = vpack.c.b16 %v515, %v511
          %v572 = vpack.c.b16 %v520, %v516
          %v573 = vpack.c.b16 %v521, %v517
          %v574 = vpack.c.b16 %v522, %v518
          %v575 = vpack.c.b16 %v523, %v519
          %v576 = vpack.c.b16 %v528, %v524
          %v577 = vpack.c.b16 %v529, %v525
          %v578 = vpack.c.b16 %v530, %v526
          %v579 = vpack.c.b16 %v531, %v527
          %v580 = vpack.c.b16 %v536, %v532
          %v581 = vpack.c.b16 %v537, %v533
          %v582 = vpack.c.b16 %v538, %v534
          %v583 = vpack.c.b16 %v539, %v535
          %v584 = vpack.c.b16 %v544, %v540
          %v585 = vpack.c.b16 %v545, %v541
          %v586 = vpack.c.b16 %v546, %v542
          %v587 = vpack.c.b16 %v547, %v543
          %v588 = vpack.c.b16 %v552, %v548
          %v589 = vpack.c.b16 %v553, %v549
          %v590 = vpack.c.b16 %v554, %v550
          %v591 = vpack.c.b16 %v555, %v551
          %v592 = vpack.c.b16 %v560, %v556
          %v593 = vpack.c.b16 %v561, %v557
          %v594 = vpack.c.b16 %v562, %v558
          %v595 = vpack.c.b16 %v563, %v559
          %628 = vmatpush.bf16.msra.mxu0 %v592
          %629 = vmatpush.bf16.msra.mxu0 %v588
          %630 = vmatpush.bf16.msra.mxu0 %v584
          %631 = vmatpush.bf16.msra.mxu0 %v580
          %632 = vmatpush.bf16.msra.mxu0 %v576
          %633 = vmatpush.bf16.msra.mxu0 %v572
          %634 = vmatpush.bf16.msra.mxu0 %v568
          %635 = vmatpush.bf16.msra.mxu0 %v564
          %636 = vmatmul.bf16.gmra.mxu0 %v466
          %v637 = vpop.f32.mrf.mxu0
          %v638 = vadd.f32 0.0, %v637
          %v639 = vpop.f32.mrf.mxu0
          %v640 = vadd.f32 0.0, %v639
          %641 = vdwg.mxu0
          %642 = vmatpush.bf16.msra.mxu0 %v593
          %643 = vmatpush.bf16.msra.mxu0 %v589
          %644 = vmatpush.bf16.msra.mxu0 %v585
          %645 = vmatpush.bf16.msra.mxu0 %v581
          %646 = vmatpush.bf16.msra.mxu0 %v577
          %647 = vmatpush.bf16.msra.mxu0 %v573
          %648 = vmatpush.bf16.msra.mxu0 %v569
          %649 = vmatpush.bf16.msra.mxu0 %v565
          %650 = vmatmul.bf16.gmra.mxu0 %v466
          %v651 = vpop.f32.mrf.mxu0
          %v652 = vadd.f32 0.0, %v651
          %v653 = vpop.f32.mrf.mxu0
          %v654 = vadd.f32 0.0, %v653
          %655 = vdwg.mxu0
          %656 = vmatpush.bf16.msra.mxu0 %v594
          %657 = vmatpush.bf16.msra.mxu0 %v590
          %658 = vmatpush.bf16.msra.mxu0 %v586
          %659 = vmatpush.bf16.msra.mxu0 %v582
          %660 = vmatpush.bf16.msra.mxu0 %v578
          %661 = vmatpush.bf16.msra.mxu0 %v574
          %662 = vmatpush.bf16.msra.mxu0 %v570
          %663 = vmatpush.bf16.msra.mxu0 %v566
          %664 = vmatmul.bf16.gmra.mxu0 %v466
          %v665 = vpop.f32.mrf.mxu0
          %v666 = vadd.f32 0.0, %v665
          %v667 = vpop.f32.mrf.mxu0
          %v668 = vadd.f32 0.0, %v667
          %669 = vdwg.mxu0
          %670 = vmatpush.bf16.msra.mxu0 %v595
          %671 = vmatpush.bf16.msra.mxu0 %v591
          %672 = vmatpush.bf16.msra.mxu0 %v587
          %673 = vmatpush.bf16.msra.mxu0 %v583
          %674 = vmatpush.bf16.msra.mxu0 %v579
          %675 = vmatpush.bf16.msra.mxu0 %v575
          %676 = vmatpush.bf16.msra.mxu0 %v571
          %677 = vmatpush.bf16.msra.mxu0 %v567
          %678 = vmatmul.bf16.gmra.mxu0 %v466
          %v679 = vpop.f32.mrf.mxu0
          %v680 = vadd.f32 0.0, %v679
          %v681 = vpop.f32.mrf.mxu0
          %v682 = vadd.f32 0.0, %v681
          %683 = vdwg.mxu0
          %v684 = vxor.u32 %v638, 2147483648
          %v685 = vxor.u32 %v652, 2147483648
          %v686 = vxor.u32 %v640, 2147483648
          %v687 = vxor.u32 %v654, 2147483648
          %v688 = vmul.f32 %v684, 1.442695
          %v689 = vpow.pop %v688
          %v690 = vmul.f32 %v685, 1.442695
          %v691 = vpow.pop %v690
          %v692 = vmul.f32 %v686, 1.442695
          %v693 = vpow.pop %v692
          %v694 = vmul.f32 %v687, 1.442695
          %v695 = vpow.pop %v694
          %v696 = vadd.f32 %v689, 1.0
          %v697 = vadd.f32 %v691, 1.0
          %v698 = vadd.f32 %v693, 1.0
          %v699 = vadd.f32 %v695, 1.0
          %v700 = vrcp.pop %v696
          %v701 = vmul.f32 %v696, %v700
          %v702 = vsub.f32 1.0, %v701
          %v703 = vmul.f32 %v700, %v702
          %v704 = vadd.f32 %v700, %v703
          %vm705 = vweird.f32 %v696
          %vm706 = vweird.f32 %v700
          %vm707 = vmor %vm705, %vm706
          %v708 = vsel %vm707, %v700, %v704
          %v709 = vand.u32 2147483647, %v696
          %vm710 = vcmp.eq.f32.partialorder %v709, 8.507059e+37
          %v711 = vand.u32 %v696, 2147483648
          %v712 = vor.u32 1.1754944e-38, %v711
          %v713 = vsel %vm710, %v712, %v708
          %v714 = vmul.f32 1.0, %v713
          %v715 = vrcp.pop %v697
          %v716 = vmul.f32 %v697, %v715
          %v717 = vsub.f32 1.0, %v716
          %v718 = vmul.f32 %v715, %v717
          %v719 = vadd.f32 %v715, %v718
          %vm720 = vweird.f32 %v697
          %vm721 = vweird.f32 %v715
          %vm722 = vmor %vm720, %vm721
          %v723 = vsel %vm722, %v715, %v719
          %v724 = vand.u32 2147483647, %v697
          %vm725 = vcmp.eq.f32.partialorder %v724, 8.507059e+37
          %v726 = vand.u32 %v697, 2147483648
          %v727 = vor.u32 1.1754944e-38, %v726
          %v728 = vsel %vm725, %v727, %v723
          %v729 = vmul.f32 1.0, %v728
          %v730 = vrcp.pop %v698
          %v731 = vmul.f32 %v698, %v730
          %v732 = vsub.f32 1.0, %v731
          %v733 = vmul.f32 %v730, %v732
          %v734 = vadd.f32 %v730, %v733
          %vm735 = vweird.f32 %v698
          %vm736 = vweird.f32 %v730
          %vm737 = vmor %vm735, %vm736
          %v738 = vsel %vm737, %v730, %v734
          %v739 = vand.u32 2147483647, %v698
          %vm740 = vcmp.eq.f32.partialorder %v739, 8.507059e+37
          %v741 = vand.u32 %v698, 2147483648
          %v742 = vor.u32 1.1754944e-38, %v741
          %v743 = vsel %vm740, %v742, %v738
          %v744 = vmul.f32 1.0, %v743
          %v745 = vrcp.pop %v699
          %v746 = vmul.f32 %v699, %v745
          %v747 = vsub.f32 1.0, %v746
          %v748 = vmul.f32 %v745, %v747
          %v749 = vadd.f32 %v745, %v748
          %vm750 = vweird.f32 %v699
          %vm751 = vweird.f32 %v745
          %vm752 = vmor %vm750, %vm751
          %v753 = vsel %vm752, %v745, %v749
          %v754 = vand.u32 2147483647, %v699
          %vm755 = vcmp.eq.f32.partialorder %v754, 8.507059e+37
          %v756 = vand.u32 %v699, 2147483648
          %v757 = vor.u32 1.1754944e-38, %v756
          %v758 = vsel %vm755, %v757, %v753
          %v759 = vmul.f32 1.0, %v758
          %v760 = vmul.f32 %v638, %v714
          %v761 = vmul.f32 %v652, %v729
          %v762 = vmul.f32 %v640, %v744
          %v763 = vmul.f32 %v654, %v759
          %v764 = vmul.f32 %v760, %v666
          %v765 = vmul.f32 %v761, %v680
          %v766 = vmul.f32 %v762, %v668
          %v767 = vmul.f32 %v763, %v682
          %v768 = vld [vmem:[%s368] sm:$0xff]
          %v769 = vld [vmem:[%s368 + $0x8] sm:$0xff]
          %771 = vset.pattern.permute.xlu0 0
          %772 = vperm.xlu0 %771, %v768
          %v773 = vpop.permute.xlu0 %772
          %776 = vset.pattern.permute.xlu0 0
          %777 = vperm.xlu0 %776, %v769
          %v778 = vpop.permute.xlu0 %777
          %v780 = vmul.f32 %v764, %v773
          %v781 = vmul.f32 %v765, %v773
          %v782 = vmul.f32 %v766, %v778
          %v783 = vmul.f32 %v767, %v778
          %v784 = vpack.c.bf16 %v782, %v780
          %v785 = vpack.c.bf16 %v783, %v781
          %v818 = vunpack.c.l.b16 %v430
          %v819 = vunpack.c.l.b16 %v431
          %v820 = vunpack.c.l.b16 %v432
          %v821 = vunpack.c.l.b16 %v433
          %v822 = vunpack.c.l.b16 %v434
          %v823 = vunpack.c.l.b16 %v435
          %v824 = vunpack.c.l.b16 %v436
          %v825 = vunpack.c.l.b16 %v437
          %v826 = vunpack.c.l.b16 %v438
          %v827 = vunpack.c.l.b16 %v439
          %v828 = vunpack.c.l.b16 %v440
          %v829 = vunpack.c.l.b16 %v441
          %v830 = vunpack.c.l.b16 %v442
          %v831 = vunpack.c.l.b16 %v443
          %v832 = vunpack.c.l.b16 %v444
          %v833 = vunpack.c.l.b16 %v445
          %v834 = vunpack.c.l.b16 %v446
          %v835 = vunpack.c.l.b16 %v447
          %v836 = vunpack.c.l.b16 %v448
          %v837 = vunpack.c.l.b16 %v449
          %v838 = vunpack.c.l.b16 %v450
          %v839 = vunpack.c.l.b16 %v451
          %v840 = vunpack.c.l.b16 %v452
          %v841 = vunpack.c.l.b16 %v453
          %v842 = vunpack.c.l.b16 %v454
          %v843 = vunpack.c.l.b16 %v455
          %v844 = vunpack.c.l.b16 %v456
          %v845 = vunpack.c.l.b16 %v457
          %v846 = vunpack.c.l.b16 %v458
          %v847 = vunpack.c.l.b16 %v459
          %v848 = vunpack.c.l.b16 %v460
          %v849 = vunpack.c.l.b16 %v461
          %v850 = vpack.c.b16 %v819, %v818
          %v851 = vpack.c.b16 %v821, %v820
          %v852 = vpack.c.b16 %v823, %v822
          %v853 = vpack.c.b16 %v825, %v824
          %v854 = vpack.c.b16 %v827, %v826
          %v855 = vpack.c.b16 %v829, %v828
          %v856 = vpack.c.b16 %v831, %v830
          %v857 = vpack.c.b16 %v833, %v832
          %v858 = vpack.c.b16 %v835, %v834
          %v859 = vpack.c.b16 %v837, %v836
          %v860 = vpack.c.b16 %v839, %v838
          %v861 = vpack.c.b16 %v841, %v840
          %v862 = vpack.c.b16 %v843, %v842
          %v863 = vpack.c.b16 %v845, %v844
          %v864 = vpack.c.b16 %v847, %v846
          %v865 = vpack.c.b16 %v849, %v848
          %882 = vmatpush.bf16.msra.mxu0 %v857
          %883 = vmatpush.bf16.msra.mxu0 %v856
          %884 = vmatpush.bf16.msra.mxu0 %v855
          %885 = vmatpush.bf16.msra.mxu0 %v854
          %886 = vmatpush.bf16.msra.mxu0 %v853
          %887 = vmatpush.bf16.msra.mxu0 %v852
          %888 = vmatpush.bf16.msra.mxu0 %v851
          %889 = vmatpush.bf16.msra.mxu0 %v850
          %890 = vmatmul.bf16.gmra.mxu0 %v784
          %v891 = vpop.f32.mrf.mxu0
          %v892 = vadd.f32 0.0, %v891
          %v893 = vpop.f32.mrf.mxu0
          %v894 = vadd.f32 0.0, %v893
          %895 = vdwg.mxu0
          %896 = vmatpush.bf16.msra.mxu0 %v865
          %897 = vmatpush.bf16.msra.mxu0 %v864
          %898 = vmatpush.bf16.msra.mxu0 %v863
          %899 = vmatpush.bf16.msra.mxu0 %v862
          %900 = vmatpush.bf16.msra.mxu0 %v861
          %901 = vmatpush.bf16.msra.mxu0 %v860
          %902 = vmatpush.bf16.msra.mxu0 %v859
          %903 = vmatpush.bf16.msra.mxu0 %v858
          %904 = vmatmul.bf16.gmra.mxu0 %v785
          %v905 = vpop.f32.mrf.mxu0
          %v906 = vadd.f32 %v892, %v905
          %v907 = vpop.f32.mrf.mxu0
          %v908 = vadd.f32 %v894, %v907
          %909 = vdwg.mxu0
          %v910 = vld [vmem:[#allocation11] sm:$0xff]
          %v911 = vld [vmem:[#allocation11 + $0x8] sm:$0xff]
          %v912 = vadd.f32 %v910, %v906
          %v913 = vadd.f32 %v911, %v908
          %914 = vst [vmem:[#allocation11] sm:$0xff] %v912
          %915 = vst [vmem:[#allocation11 + $0x8] sm:$0xff] %v913
        $region52: #{tpu_custom_call.1} parent=35 // pred_fallthru
          _
        // Predicated region
        $region53: #{tpu_custom_call.1} parent=35 // pred_check
          %p916 = pneg %p192
        $region54: #{tpu_custom_call.1} parent=35 // pred_check_branch
          %918 = sbr.rel (%p916) target = $region56
        $region55: #{tpu_custom_call.1} parent=35 // pred_region
          %s919 = smul.u32 2, %s44
          %921 = vsyncadd [#allocation8], 0
          %s922 = smul.addr %s919, 8
          %s923 = scalar_lea.hbm %s7, %s922
          %s924 = sshll.u32 [#allocation11], 4
          %s925 = int_to_ptr.vmem [resolvable:$true] %s924
          %s926 = sshll.u32 %s923, 4
          %s927 = int_to_ptr.hbm [resolvable:$true] %s926
          %932 = dma.vmem_to_hbm [thread:$0]  %s925, 256, %s927, [#allocation8], 128, 128, 8
        $region56: #{tpu_custom_call.1} parent=35 // pred_fallthru
          _
        // Predicated region
        $region57: #{tpu_custom_call.1} parent=35 // pred_check
          %p933 = pneg %p192
        $region58: #{tpu_custom_call.1} parent=35 // pred_check_branch
          %935 = sbr.rel (%p933) target = $region60
        $region59: #{tpu_custom_call.1} parent=35 // pred_region
          %937 = dma.done [#allocation8], 256
        $region60: #{tpu_custom_call.1} parent=35 // pred_fallthru
          _
      $region36: #{tpu_custom_call.1} parent=5 // pred_fallthru
        _
      %p938 = scmp.le.s32.totalorder 2, %s34
      // Predicated region
      $region61: #{tpu_custom_call.1} parent=5 // pred_check
        %p939 = pneg %p938
      $region62: #{tpu_custom_call.1} parent=5 // pred_check_branch
        %941 = sbr.rel (%p939) target = $region64
      $region63: #{tpu_custom_call.1} parent=5 // pred_region
        %s942 = ssub.s32 %s34, 2
      $region64: #{tpu_custom_call.1} parent=5 // pred_fallthru
        _
    $region6: #{tpu_custom_call.1} parent=1 // loop_footer
      %s38 = sadd.s32 1, %s34
    $region7: #{tpu_custom_call.1} parent=1 // loop_footer_branch
      %33 = sbr.rel target = $region3
    $region8: #{tpu_custom_call.1} parent=1 // loop_exit
      _
    %943 = vsyncpa [#allocation7], 1
    %s944 = scalar_lea.sflag [#allocation7], 1
    %945 = vsyncpa %s944, 1
    %946 = vsyncpa [#allocation10], 1
    %s947 = scalar_lea.sflag [#allocation10], 1
    %948 = vsyncpa %s947, 1
    %949 = vsyncpa [#allocation8], 1
    %s950 = scalar_lea.sflag [#allocation8], 1
    %951 = vsyncpa %s950, 1

</llo_original>
